<compile_context>
chip_gen: v5e
topology: v5e:2x2
jax: 0.10.0
libtpu: 0.0.40
codegen_flags: <defaults>
</compile_context>

<pallas_src>
import functools

import jax
import jax.numpy as jnp
from jax.experimental import pallas as pl
from jax.experimental.pallas import tpu as pltpu

LANES = 128


def _round_up(n, m):
    return (n + m - 1) // m * m


def _slab_layout(E, D, L, H):
    """Row offsets (multiples of 8) of each section in the packed weight slab."""
    sections = [
        ("w1", D),          # (D, E*H)        encoder layer 1, expert-concatenated
        ("b1", 1),          # (1, E*H)
        ("wmulv", E * H),   # (E*H, 128)      fused [mu|lv] block matrix, zero padded
        ("bmulv", 1),       # (1, 128)
        ("dw1", LANES),     # (128, E*H)      decoder layer 1, rows indexed by mulv lanes
        ("db1", 1),         # (1, E*H)
        ("dw2", E * H),     # (E*H, E*D)      decoder layer 2, block diagonal
        ("db2", 1),         # (1, E*D)
    ]
    layout, off = {}, 0
    for name, n in sections:
        layout[name] = off
        off += _round_up(n, 8)
    return layout, off


def pack_params(params):
    """Pack per-expert weights into ONE lane-dense (rows, 128) f32 slab.

    Call once at parameter-init time; only x and the slab reach pallas_call.
    """
    E, D, H = params["enc_w1"].shape
    L = params["enc_wmu"].shape[-1]
    assert E * H == LANES and E * D == LANES and 2 * E * L <= LANES, (
        "packing assumes E*H == E*D == 128 and 2*E*L <= 128")

    layout, total_rows = _slab_layout(E, D, L, H)
    slab = jnp.zeros((total_rows, LANES), jnp.float32)

    def put(slab, name, r0, c0, block):
        r = layout[name] + r0
        return slab.at[r:r + block.shape[0], c0:c0 + block.shape[1]].set(
            block.astype(jnp.float32))

    for e in range(E):
        slab = put(slab, "w1", 0, e * H, params["enc_w1"][e])              # (D,H)
        slab = put(slab, "b1", 0, e * H, params["enc_b1"][e])              # (1,H)
        slab = put(slab, "wmulv", e * H, 2 * L * e, params["enc_wmu"][e])  # (H,L)
        slab = put(slab, "wmulv", e * H, 2 * L * e + L, params["enc_wlv"][e])
        slab = put(slab, "bmulv", 0, 2 * L * e, params["enc_bmu"][e])
        slab = put(slab, "bmulv", 0, 2 * L * e + L, params["enc_blv"][e])
        slab = put(slab, "dw1", 2 * L * e, e * H, params["dec_w1"][e])     # (L,H)
        slab = put(slab, "db1", 0, e * H, params["dec_b1"][e])
        slab = put(slab, "dw2", e * H, e * D, params["dec_w2"][e])         # (H,D)
        slab = put(slab, "db2", 0, e * D, params["dec_b2"][e])

    meta = dict(E=E, D=D, L=L, H=H, layout=layout, rows=total_rows)
    return slab, meta


def _fused_moe_kernel(meta, x_ref, slab_ref, out_ref):
    E, D, L, H = meta["E"], meta["D"], meta["L"], meta["H"]
    lay = meta["layout"]
    f32 = jnp.float32

    def rows(name, n):
        return slab_ref[pl.ds(lay[name], n), :]

    x = x_ref[...]                                   # (B, D)
    B = x.shape[0]

    w1 = rows("w1", D)                               # (D, 128)
    b1 = rows("b1", 1)                               # (1, 128)
    wmulv = rows("wmulv", E * H)                     # (128, 128)
    bmulv = rows("bmulv", 1)
    dw1 = rows("dw1", LANES)                         # (128, 128)
    db1 = rows("db1", 1)
    dw2 = rows("dw2", E * H)                         # (128, 128)
    db2 = rows("db2", 1)

    # ---- all experts at once: one 128-lane MXU matmul per layer -------------
    h = jnp.maximum(jnp.dot(x, w1, preferred_element_type=f32) + b1, 0.0)   # (B, E*H)
    mulv = jnp.dot(h, wmulv, preferred_element_type=f32) + bmulv            # (B, 128)
    # lanes [2*L*e : 2*L*e+L] = mu_e, [2*L*e+L : 2*L*(e+1)] = lv_e, rest zero.
    # z = mu (deterministic decode; see TODO above). dw1 rows for lv lanes are 0.
    h2 = jnp.maximum(jnp.dot(mulv, dw1, preferred_element_type=f32) + db1, 0.0)
    xhat = jnp.dot(h2, dw2, preferred_element_type=f32) + db2               # (B, E*D)

    # ---- per-expert recon loss: unrolled static slices + lane reductions ----
    loss_e = []
    for e in range(E):
        d = xhat[:, e * D:(e + 1) * D] - x
        loss_e.append(jnp.mean(d * d, axis=-1, keepdims=True))              # (B, 1)

    # ---- fused argmin (first-min tie-break) + winner gather, unrolled -------
    min_loss = loss_e[0]
    idx_f = jnp.zeros((B, 1), f32)
    mu_w = mulv[:, 0:L]
    lv_w = mulv[:, L:2 * L]
    xh_w = xhat[:, 0:D]
    for e in range(1, E):
        better = loss_e[e] < min_loss                                        # (B, 1)
        min_loss = jnp.where(better, loss_e[e], min_loss)
        idx_f = jnp.where(better, jnp.float32(e), idx_f)
        mu_w = jnp.where(better, mulv[:, 2 * L * e:2 * L * e + L], mu_w)
        lv_w = jnp.where(better, mulv[:, 2 * L * e + L:2 * L * (e + 1)], lv_w)
        xh_w = jnp.where(better, xhat[:, e * D:(e + 1) * D], xh_w)

    # ---- single lane-dense (B, 128) output slab, one unmasked store ---------
    pad = LANES - (2 * L + D + 16)
    out_ref[...] = jnp.concatenate(
        [mu_w, lv_w, xh_w,
         jnp.broadcast_to(min_loss, (B, 8)),
         jnp.broadcast_to(idx_f, (B, 8)),
         jnp.zeros((B, pad), f32)], axis=-1)


def mono_moe_forward(x, slab, meta):
    """Pallas implementation of MonoMoE.forward on pre-packed weights.

    Returns (mu, logvar, xhat, expert_idx, losses) for the per-sample winning
    expert, exactly like the torch module.
    """
    B, D = x.shape
    L = meta["L"]
    flops = 2 * B * D * LANES + 3 * 2 * B * LANES * LANES
    bytes_accessed = (slab.size + x.size + B * LANES) * 4

    out = pl.pallas_call(
        functools.partial(_fused_moe_kernel, meta),
        out_shape=jax.ShapeDtypeStruct((B, LANES), jnp.float32),
        in_specs=[pl.BlockSpec(memory_space=pltpu.MemorySpace.VMEM),
                  pl.BlockSpec(memory_space=pltpu.MemorySpace.VMEM)],
        out_specs=pl.BlockSpec(memory_space=pltpu.MemorySpace.VMEM),
        cost_estimate=pl.CostEstimate(flops=flops, transcendentals=0,
                                      bytes_accessed=bytes_accessed),
    )(x, slab)

    mu = out[:, 0:L]
    lv = out[:, L:2 * L]
    xh = out[:, 2 * L:2 * L + D]
    loss = out[:, 2 * L + D]
    idx = out[:, 2 * L + D + 8].astype(jnp.int32)
    return mu, lv, xh, idx, loss


def _reference_forward(x, params):
    """Pure-JAX reference (same math, no Pallas) for correctness checking."""
    def one_expert(p):
        ew1, eb1, ewm, ebm, ewv, ebv, dw1, db1, dw2, db2 = p
        h = jnp.maximum(x @ ew1 + eb1, 0.0)
        mu = h @ ewm + ebm
        lv = h @ ewv + ebv
        h2 = jnp.maximum(mu @ dw1 + db1, 0.0)
        xh = h2 @ dw2 + db2
        loss = jnp.mean((xh - x) ** 2, axis=-1)
        return mu, lv, xh, loss

    keys = ["enc_w1", "enc_b1", "enc_wmu", "enc_bmu", "enc_wlv", "enc_blv",
            "dec_w1", "dec_b1", "dec_w2", "dec_b2"]
    mu_e, lv_e, xh_e, loss_e = jax.vmap(one_expert)(
        tuple(params[k] for k in keys))
    expert_idx = jnp.argmin(loss_e, axis=0)
    losses = jnp.min(loss_e, axis=0)
    b = jnp.arange(x.shape[0])
    return (mu_e[expert_idx, b], lv_e[expert_idx, b], xh_e[expert_idx, b],
            expert_idx, losses)


def init_params(key, num_experts, input_dim, latent_dim, hidden_dim):
    """Deterministic PyTorch-style U(-1/sqrt(fan_in), 1/sqrt(fan_in)) init."""
    def lin(k, fan_in, shape):
        bound = 1.0 / (fan_in ** 0.5)
        return jax.random.uniform(k, shape, jnp.float32, -bound, bound)

    E, D, L, H = num_experts, input_dim, latent_dim, hidden_dim
    ks = jax.random.split(key, 10)
    return {
        "enc_w1":  lin(ks[0], D, (E, D, H)),
        "enc_b1":  lin(ks[1], D, (E, 1, H)),
        "enc_wmu": lin(ks[2], H, (E, H, L)),
        "enc_bmu": lin(ks[3], H, (E, 1, L)),
        "enc_wlv": lin(ks[4], H, (E, H, L)),
        "enc_blv": lin(ks[5], H, (E, 1, L)),
        "dec_w1":  lin(ks[6], L, (E, L, H)),
        "dec_b1":  lin(ks[7], L, (E, 1, H)),
        "dec_w2":  lin(ks[8], H, (E, H, D)),
        "dec_b2":  lin(ks[9], H, (E, 1, D)),
    }


if __name__ == "__main__":
    # Shapes consistent with MonoMoE(num_experts=4, input_dim=32, latent_dim=8,
    # num_mlp_layers=2) applied to x of shape (B=8, 32); hidden_dim=32.
    num_experts, input_dim, latent_dim, hidden_dim = 4, 32, 8, 32
    B = 8

    root = jax.random.PRNGKey(0)
    k_x, k_p = jax.random.split(root)
    x = jax.random.normal(k_x, (B, input_dim), dtype=jnp.float32)
    params = init_params(k_p, num_experts, input_dim, latent_dim, hidden_dim)

    # Pack ONCE, outside the per-call path.
    slab, meta = pack_params(params)
    slab = jax.block_until_ready(slab)

    forward = jax.jit(lambda xx, ss: mono_moe_forward(xx, ss, meta))
    mu, logvar, xhat, expert_idx, losses = jax.block_until_ready(
        forward(x, slab))

    # sanity check against the pure-JAX reference
    r_mu, r_lv, r_xh, r_idx, r_loss = _reference_forward(x, params)
    assert mu.shape == (B, latent_dim)
    assert logvar.shape == (B, latent_dim)
    assert xhat.shape == (B, input_dim)
    assert expert_idx.shape == (B,)
    assert losses.shape == (B,)
    assert jnp.allclose(mu, r_mu, atol=1e-4)
    assert jnp.allclose(logvar, r_lv, atol=1e-4)
    assert jnp.allclose(xhat, r_xh, atol=1e-4)
    assert jnp.array_equal(expert_idx, r_idx)
    assert jnp.allclose(losses, r_loss, atol=1e-4)

    print("KERNEL_OK")
</pallas_src>

<mosaic_0001>
module attributes {stable_mosaic.version = 11 : i64} {
  func.func @_fused_moe_kernel(%arg0: memref<8x32xf32, #tpu.memory_space<vmem>>, %arg1: memref<448x128xf32, #tpu.memory_space<vmem>>, %arg2: memref<8x128xf32, #tpu.memory_space<vmem>>) attributes {dimension_semantics = [], scalar_prefetch = 0 : i64, scratch_operands = 0 : i64, tpu.core_type = #tpu.core_type<tc>} {
    %c0 = arith.constant 0 : index
    %c0_0 = arith.constant 0 : index
    %0 = vector.load %arg0[%c0, %c0_0] : memref<8x32xf32, #tpu.memory_space<vmem>>, vector<8x32xf32>
    %c0_1 = arith.constant 0 : index
    %c0_2 = arith.constant 0 : index
    %1 = vector.load %arg1[%c0_1, %c0_2] : memref<448x128xf32, #tpu.memory_space<vmem>>, vector<32x128xf32>
    %c32 = arith.constant 32 : index
    %c0_3 = arith.constant 0 : index
    %2 = vector.load %arg1[%c32, %c0_3] : memref<448x128xf32, #tpu.memory_space<vmem>>, vector<1x128xf32>
    %c40 = arith.constant 40 : index
    %c0_4 = arith.constant 0 : index
    %3 = vector.load %arg1[%c40, %c0_4] : memref<448x128xf32, #tpu.memory_space<vmem>>, vector<128x128xf32>
    %c168 = arith.constant 168 : index
    %c0_5 = arith.constant 0 : index
    %4 = vector.load %arg1[%c168, %c0_5] : memref<448x128xf32, #tpu.memory_space<vmem>>, vector<1x128xf32>
    %c176 = arith.constant 176 : index
    %c0_6 = arith.constant 0 : index
    %5 = vector.load %arg1[%c176, %c0_6] : memref<448x128xf32, #tpu.memory_space<vmem>>, vector<128x128xf32>
    %c304 = arith.constant 304 : index
    %c0_7 = arith.constant 0 : index
    %6 = vector.load %arg1[%c304, %c0_7] : memref<448x128xf32, #tpu.memory_space<vmem>>, vector<1x128xf32>
    %c312 = arith.constant 312 : index
    %c0_8 = arith.constant 0 : index
    %7 = vector.load %arg1[%c312, %c0_8] : memref<448x128xf32, #tpu.memory_space<vmem>>, vector<128x128xf32>
    %c440 = arith.constant 440 : index
    %c0_9 = arith.constant 0 : index
    %8 = vector.load %arg1[%c440, %c0_9] : memref<448x128xf32, #tpu.memory_space<vmem>>, vector<1x128xf32>
    %cst = arith.constant dense<0.000000e+00> : vector<8x128xf32>
    %9 = tpu.matmul %0, %1, %cst {dimension_numbers = #tpu.dot_dimension_numbers<[1], [0], [0], [1], [0, 0, 1, 1], [], []>} : vector<8x32xf32>, vector<32x128xf32>, vector<8x128xf32> -> vector<8x128xf32>
    %10 = vector.broadcast %2 : vector<1x128xf32> to vector<8x128xf32>
    %11 = arith.addf %9, %10 : vector<8x128xf32>
    %cst_10 = arith.constant 0.000000e+00 : f32
    %12 = vector.broadcast %cst_10 : f32 to vector<8x128xf32>
    %13 = arith.maximumf %11, %12 : vector<8x128xf32>
    %cst_11 = arith.constant dense<0.000000e+00> : vector<8x128xf32>
    %14 = tpu.matmul %13, %3, %cst_11 {dimension_numbers = #tpu.dot_dimension_numbers<[1], [0], [0], [1], [0, 0, 1, 1], [], []>} : vector<8x128xf32>, vector<128x128xf32>, vector<8x128xf32> -> vector<8x128xf32>
    %15 = vector.broadcast %4 : vector<1x128xf32> to vector<8x128xf32>
    %16 = arith.addf %14, %15 : vector<8x128xf32>
    %cst_12 = arith.constant dense<0.000000e+00> : vector<8x128xf32>
    %17 = tpu.matmul %16, %5, %cst_12 {dimension_numbers = #tpu.dot_dimension_numbers<[1], [0], [0], [1], [0, 0, 1, 1], [], []>} : vector<8x128xf32>, vector<128x128xf32>, vector<8x128xf32> -> vector<8x128xf32>
    %18 = vector.broadcast %6 : vector<1x128xf32> to vector<8x128xf32>
    %19 = arith.addf %17, %18 : vector<8x128xf32>
    %cst_13 = arith.constant 0.000000e+00 : f32
    %20 = vector.broadcast %cst_13 : f32 to vector<8x128xf32>
    %21 = arith.maximumf %19, %20 : vector<8x128xf32>
    %cst_14 = arith.constant dense<0.000000e+00> : vector<8x128xf32>
    %22 = tpu.matmul %21, %7, %cst_14 {dimension_numbers = #tpu.dot_dimension_numbers<[1], [0], [0], [1], [0, 0, 1, 1], [], []>} : vector<8x128xf32>, vector<128x128xf32>, vector<8x128xf32> -> vector<8x128xf32>
    %23 = vector.broadcast %8 : vector<1x128xf32> to vector<8x128xf32>
    %24 = arith.addf %22, %23 : vector<8x128xf32>
    %25 = vector.extract_strided_slice %24 {offsets = [0, 0], sizes = [8, 32], strides = [1, 1]} : vector<8x128xf32> to vector<8x32xf32>
    %26 = arith.subf %25, %0 : vector<8x32xf32>
    %27 = arith.mulf %26, %26 : vector<8x32xf32>
    %cst_15 = arith.constant dense<0.000000e+00> : vector<8xf32>
    %28 = vector.multi_reduction <add>, %27, %cst_15 [1] : vector<8x32xf32> to vector<8xf32>
    %29 = vector.shape_cast %28 : vector<8xf32> to vector<8x1xf32>
    %cst_16 = arith.constant 3.200000e+01 : f32
    %30 = vector.broadcast %cst_16 : f32 to vector<8x1xf32>
    %31 = arith.divf %29, %30 : vector<8x1xf32>
    %32 = vector.extract_strided_slice %24 {offsets = [0, 32], sizes = [8, 32], strides = [1, 1]} : vector<8x128xf32> to vector<8x32xf32>
    %33 = arith.subf %32, %0 : vector<8x32xf32>
    %34 = arith.mulf %33, %33 : vector<8x32xf32>
    %cst_17 = arith.constant dense<0.000000e+00> : vector<8xf32>
    %35 = vector.multi_reduction <add>, %34, %cst_17 [1] : vector<8x32xf32> to vector<8xf32>
    %36 = vector.shape_cast %35 : vector<8xf32> to vector<8x1xf32>
    %cst_18 = arith.constant 3.200000e+01 : f32
    %37 = vector.broadcast %cst_18 : f32 to vector<8x1xf32>
    %38 = arith.divf %36, %37 : vector<8x1xf32>
    %39 = vector.extract_strided_slice %24 {offsets = [0, 64], sizes = [8, 32], strides = [1, 1]} : vector<8x128xf32> to vector<8x32xf32>
    %40 = arith.subf %39, %0 : vector<8x32xf32>
    %41 = arith.mulf %40, %40 : vector<8x32xf32>
    %cst_19 = arith.constant dense<0.000000e+00> : vector<8xf32>
    %42 = vector.multi_reduction <add>, %41, %cst_19 [1] : vector<8x32xf32> to vector<8xf32>
    %43 = vector.shape_cast %42 : vector<8xf32> to vector<8x1xf32>
    %cst_20 = arith.constant 3.200000e+01 : f32
    %44 = vector.broadcast %cst_20 : f32 to vector<8x1xf32>
    %45 = arith.divf %43, %44 : vector<8x1xf32>
    %46 = vector.extract_strided_slice %24 {offsets = [0, 96], sizes = [8, 32], strides = [1, 1]} : vector<8x128xf32> to vector<8x32xf32>
    %47 = arith.subf %46, %0 : vector<8x32xf32>
    %48 = arith.mulf %47, %47 : vector<8x32xf32>
    %cst_21 = arith.constant dense<0.000000e+00> : vector<8xf32>
    %49 = vector.multi_reduction <add>, %48, %cst_21 [1] : vector<8x32xf32> to vector<8xf32>
    %50 = vector.shape_cast %49 : vector<8xf32> to vector<8x1xf32>
    %cst_22 = arith.constant 3.200000e+01 : f32
    %51 = vector.broadcast %cst_22 : f32 to vector<8x1xf32>
    %52 = arith.divf %50, %51 : vector<8x1xf32>
    %cst_23 = arith.constant 0.000000e+00 : f32
    %53 = vector.broadcast %cst_23 : f32 to vector<8x1xf32>
    %54 = vector.extract_strided_slice %16 {offsets = [0, 0], sizes = [8, 8], strides = [1, 1]} : vector<8x128xf32> to vector<8x8xf32>
    %55 = vector.extract_strided_slice %16 {offsets = [0, 8], sizes = [8, 8], strides = [1, 1]} : vector<8x128xf32> to vector<8x8xf32>
    %56 = vector.extract_strided_slice %24 {offsets = [0, 0], sizes = [8, 32], strides = [1, 1]} : vector<8x128xf32> to vector<8x32xf32>
    %57 = arith.cmpf olt, %38, %31 : vector<8x1xf32>
    %58 = arith.select %57, %38, %31 : vector<8x1xi1>, vector<8x1xf32>
    %cst_24 = arith.constant 1.000000e+00 : f32
    %59 = vector.broadcast %cst_24 : f32 to vector<8x1xf32>
    %60 = arith.select %57, %59, %53 : vector<8x1xi1>, vector<8x1xf32>
    %61 = vector.extract_strided_slice %16 {offsets = [0, 16], sizes = [8, 8], strides = [1, 1]} : vector<8x128xf32> to vector<8x8xf32>
    %62 = vector.shape_cast %57 : vector<8x1xi1> to vector<8x1xi1>
    %63 = vector.broadcast %62 : vector<8x1xi1> to vector<8x8xi1>
    %64 = arith.select %63, %61, %54 : vector<8x8xi1>, vector<8x8xf32>
    %65 = vector.extract_strided_slice %16 {offsets = [0, 24], sizes = [8, 8], strides = [1, 1]} : vector<8x128xf32> to vector<8x8xf32>
    %66 = vector.shape_cast %57 : vector<8x1xi1> to vector<8x1xi1>
    %67 = vector.broadcast %66 : vector<8x1xi1> to vector<8x8xi1>
    %68 = arith.select %67, %65, %55 : vector<8x8xi1>, vector<8x8xf32>
    %69 = vector.extract_strided_slice %24 {offsets = [0, 32], sizes = [8, 32], strides = [1, 1]} : vector<8x128xf32> to vector<8x32xf32>
    %70 = vector.shape_cast %57 : vector<8x1xi1> to vector<8x1xi1>
    %71 = vector.broadcast %70 : vector<8x1xi1> to vector<8x32xi1>
    %72 = arith.select %71, %69, %56 : vector<8x32xi1>, vector<8x32xf32>
    %73 = arith.cmpf olt, %45, %58 : vector<8x1xf32>
    %74 = arith.select %73, %45, %58 : vector<8x1xi1>, vector<8x1xf32>
    %cst_25 = arith.constant 2.000000e+00 : f32
    %75 = vector.broadcast %cst_25 : f32 to vector<8x1xf32>
    %76 = arith.select %73, %75, %60 : vector<8x1xi1>, vector<8x1xf32>
    %77 = vector.extract_strided_slice %16 {offsets = [0, 32], sizes = [8, 8], strides = [1, 1]} : vector<8x128xf32> to vector<8x8xf32>
    %78 = vector.shape_cast %73 : vector<8x1xi1> to vector<8x1xi1>
    %79 = vector.broadcast %78 : vector<8x1xi1> to vector<8x8xi1>
    %80 = arith.select %79, %77, %64 : vector<8x8xi1>, vector<8x8xf32>
    %81 = vector.extract_strided_slice %16 {offsets = [0, 40], sizes = [8, 8], strides = [1, 1]} : vector<8x128xf32> to vector<8x8xf32>
    %82 = vector.shape_cast %73 : vector<8x1xi1> to vector<8x1xi1>
    %83 = vector.broadcast %82 : vector<8x1xi1> to vector<8x8xi1>
    %84 = arith.select %83, %81, %68 : vector<8x8xi1>, vector<8x8xf32>
    %85 = vector.extract_strided_slice %24 {offsets = [0, 64], sizes = [8, 32], strides = [1, 1]} : vector<8x128xf32> to vector<8x32xf32>
    %86 = vector.shape_cast %73 : vector<8x1xi1> to vector<8x1xi1>
    %87 = vector.broadcast %86 : vector<8x1xi1> to vector<8x32xi1>
    %88 = arith.select %87, %85, %72 : vector<8x32xi1>, vector<8x32xf32>
    %89 = arith.cmpf olt, %52, %74 : vector<8x1xf32>
    %90 = arith.select %89, %52, %74 : vector<8x1xi1>, vector<8x1xf32>
    %cst_26 = arith.constant 3.000000e+00 : f32
    %91 = vector.broadcast %cst_26 : f32 to vector<8x1xf32>
    %92 = arith.select %89, %91, %76 : vector<8x1xi1>, vector<8x1xf32>
    %93 = vector.extract_strided_slice %16 {offsets = [0, 48], sizes = [8, 8], strides = [1, 1]} : vector<8x128xf32> to vector<8x8xf32>
    %94 = vector.shape_cast %89 : vector<8x1xi1> to vector<8x1xi1>
    %95 = vector.broadcast %94 : vector<8x1xi1> to vector<8x8xi1>
    %96 = arith.select %95, %93, %80 : vector<8x8xi1>, vector<8x8xf32>
    %97 = vector.extract_strided_slice %16 {offsets = [0, 56], sizes = [8, 8], strides = [1, 1]} : vector<8x128xf32> to vector<8x8xf32>
    %98 = vector.shape_cast %89 : vector<8x1xi1> to vector<8x1xi1>
    %99 = vector.broadcast %98 : vector<8x1xi1> to vector<8x8xi1>
    %100 = arith.select %99, %97, %84 : vector<8x8xi1>, vector<8x8xf32>
    %101 = vector.extract_strided_slice %24 {offsets = [0, 96], sizes = [8, 32], strides = [1, 1]} : vector<8x128xf32> to vector<8x32xf32>
    %102 = vector.shape_cast %89 : vector<8x1xi1> to vector<8x1xi1>
    %103 = vector.broadcast %102 : vector<8x1xi1> to vector<8x32xi1>
    %104 = arith.select %103, %101, %88 : vector<8x32xi1>, vector<8x32xf32>
    %105 = vector.shape_cast %90 : vector<8x1xf32> to vector<8x1xf32>
    %106 = vector.broadcast %105 : vector<8x1xf32> to vector<8x8xf32>
    %107 = vector.shape_cast %92 : vector<8x1xf32> to vector<8x1xf32>
    %108 = vector.broadcast %107 : vector<8x1xf32> to vector<8x8xf32>
    %cst_27 = arith.constant 0.000000e+00 : f32
    %109 = vector.broadcast %cst_27 : f32 to vector<8x64xf32>
    %110 = tpu.concatenate %96, %100, %104, %106, %108, %109 in 1 : vector<8x8xf32>, vector<8x8xf32>, vector<8x32xf32>, vector<8x8xf32>, vector<8x8xf32>, vector<8x64xf32> -> vector<8x128xf32>
    %c0_28 = arith.constant 0 : index
    %c0_29 = arith.constant 0 : index
    %111 = vector.load %arg2[%c0_28, %c0_29] : memref<8x128xf32, #tpu.memory_space<vmem>>, vector<8x128xf32>
    tpu.vector_store %arg2[%c0_28, %c0_29], %110 {strides = array<i32>} : memref<8x128xf32, #tpu.memory_space<vmem>>, vector<8x128xf32>,
    return
  }
}

</mosaic_0001>

<llo_original>
// kernel: _lambda_.1
$region0: #{_lambda_.1}
  #allocation0 [shape = 'u32[]', space=smem, size = 0x4, offset = 0x4, fixed_abs, tag = 'smem constant byte address 0x4 - core index']
  #allocation1 [shape = 'u32[72,128]{1,0:T(1,128)}', space=vmem, size = 0x9000, scoped, tag = 'internal scratch']
  %s0 = inlined_call_operand.hbm [shape: f32[8,32], index: 0, kind: input, shape index: {}]
  %s1 = inlined_call_operand.hbm [shape: f32[448,128], index: 1, kind: input, shape index: {}]
  %s2 = inlined_call_operand.vmem [shape: f32[8,128], index: 2, kind: output, shape index: {}]
  %s3 = sld [smem:[#allocation0]]
  $region26: #{_lambda_.1} parent=0
    _
  %s5 = ssub.s32 1, %s3
  %s6 = scalar_select 0, %s5, %s3
  $region1: #{_lambda_.1} parent=0
    #allocation2 [shape = 'u8[4096]{0}', space=vmem, size = 0x1000, scoped, tag = 'input window, operand 0, single buffered']
    #allocation3 [shape = 's32[1]{0}', space=sflag, size = 0x4, scoped, tag = 'scoped memory for _lambda_.1']
    #allocation4 [shape = 'u8[229376]{0}', space=vmem, size = 0x38000, scoped, tag = 'input window, operand 1, single buffered']
    #allocation5 [shape = 's32[1]{0}', space=sflag, size = 0x4, scoped, tag = 'scoped memory for _lambda_.1']
    %7 = vsyncpa [#allocation3], 0
    %8 = vsyncpa [#allocation5], 0
    // Predicated region
    $region2: #{_lambda_.1} parent=1 // pred_check
      _
    $region3: #{_lambda_.1} parent=1 // pred_check_branch
      %10 = sbr.rel (0) target = $region5
    $region4: #{_lambda_.1} parent=1 // pred_region
      %12 = vsyncadd [#allocation3], 0
      %s14 = sshll.u32 %s0, 4
      %s15 = int_to_ptr.hbm [resolvable:$true] %s14
      %s16 = sshll.u32 [#allocation2], 4
      %s17 = int_to_ptr.vmem [resolvable:$true] %s16
      %19 = dma.hbm_to_vmem [thread:$0]  %s15, 128, %s17, [#allocation3]
    $region5: #{_lambda_.1} parent=1 // pred_fallthru
      _
    // Predicated region
    $region6: #{_lambda_.1} parent=1 // pred_check
      _
    $region7: #{_lambda_.1} parent=1 // pred_check_branch
      %21 = sbr.rel (0) target = $region9
    $region8: #{_lambda_.1} parent=1 // pred_region
      %23 = vsyncadd [#allocation5], 0
      %s24 = sshll.u32 %s1, 4
      %s25 = int_to_ptr.hbm [resolvable:$true] %s24
      %s26 = sshll.u32 [#allocation4], 4
      %s27 = int_to_ptr.vmem [resolvable:$true] %s26
      %32 = dma.hbm_to_vmem [thread:$0]  %s25, 7168, %s27, [#allocation5], 128, 128, 8
    $region9: #{_lambda_.1} parent=1 // pred_fallthru
      _
    // Predicated region
    $region10: #{_lambda_.1} parent=1 // pred_check
      _
    $region11: #{_lambda_.1} parent=1 // pred_check_branch
      %34 = sbr.rel (0) target = $region13
    $region12: #{_lambda_.1} parent=1 // pred_region
      %36 = dma.done [#allocation3], 128
    $region13: #{_lambda_.1} parent=1 // pred_fallthru
      _
    // Predicated region
    $region14: #{_lambda_.1} parent=1 // pred_check
      _
    $region15: #{_lambda_.1} parent=1 // pred_check_branch
      %38 = sbr.rel (0) target = $region17
    $region16: #{_lambda_.1} parent=1 // pred_region
      %40 = dma.done [#allocation5], 7168
    $region17: #{_lambda_.1} parent=1 // pred_fallthru
      _
    %v41 = vld [vmem:[#allocation2] sm:$0xff]
    %v42 = vld [vmem:[#allocation4] sm:$0xff]
    %v43 = vld [vmem:[#allocation4 + $0x8] sm:$0xff]
    %v44 = vld [vmem:[#allocation4 + $0x10] sm:$0xff]
    %v45 = vld [vmem:[#allocation4 + $0x18] sm:$0xff]
    %v46 = vld [vmem:[#allocation4 + $0x20] sm:$0x1]
    %v47 = vld [vmem:[#allocation4 + $0x28] sm:$0xff]
    %v48 = vld [vmem:[#allocation4 + $0x30] sm:$0xff]
    %v49 = vld [vmem:[#allocation4 + $0x38] sm:$0xff]
    %v50 = vld [vmem:[#allocation4 + $0x40] sm:$0xff]
    %v51 = vld [vmem:[#allocation4 + $0x48] sm:$0xff]
    %v52 = vld [vmem:[#allocation4 + $0x50] sm:$0xff]
    %v53 = vld [vmem:[#allocation4 + $0x58] sm:$0xff]
    %v54 = vld [vmem:[#allocation4 + $0x60] sm:$0xff]
    %v55 = vld [vmem:[#allocation4 + $0x68] sm:$0xff]
    %v56 = vld [vmem:[#allocation4 + $0x70] sm:$0xff]
    %v57 = vld [vmem:[#allocation4 + $0x78] sm:$0xff]
    %v58 = vld [vmem:[#allocation4 + $0x80] sm:$0xff]
    %v59 = vld [vmem:[#allocation4 + $0x88] sm:$0xff]
    %v60 = vld [vmem:[#allocation4 + $0x90] sm:$0xff]
    %v61 = vld [vmem:[#allocation4 + $0x98] sm:$0xff]
    %v62 = vld [vmem:[#allocation4 + $0xa0] sm:$0xff]
    %v63 = vld [vmem:[#allocation4 + $0xa8] sm:$0x1]
    %v64 = vld [vmem:[#allocation4 + $0xb0] sm:$0xff]
    %v65 = vld [vmem:[#allocation4 + $0xb8] sm:$0xff]
    %v66 = vld [vmem:[#allocation4 + $0xc0] sm:$0xff]
    %v67 = vld [vmem:[#allocation4 + $0xc8] sm:$0xff]
    %v68 = vld [vmem:[#allocation4 + $0xd0] sm:$0xff]
    %v69 = vld [vmem:[#allocation4 + $0xd8] sm:$0xff]
    %v70 = vld [vmem:[#allocation4 + $0xe0] sm:$0xff]
    %v71 = vld [vmem:[#allocation4 + $0xe8] sm:$0xff]
    %v72 = vld [vmem:[#allocation4 + $0xf0] sm:$0xff]
    %v73 = vld [vmem:[#allocation4 + $0xf8] sm:$0xff]
    %v74 = vld [vmem:[#allocation4 + $0x100] sm:$0xff]
    %v75 = vld [vmem:[#allocation4 + $0x108] sm:$0xff]
    %v76 = vld [vmem:[#allocation4 + $0x110] sm:$0xff]
    %v77 = vld [vmem:[#allocation4 + $0x118] sm:$0xff]
    %v78 = vld [vmem:[#allocation4 + $0x120] sm:$0xff]
    %v79 = vld [vmem:[#allocation4 + $0x128] sm:$0xff]
    %v80 = vld [vmem:[#allocation4 + $0x130] sm:$0x1]
    %v81 = vld [vmem:[#allocation4 + $0x138] sm:$0xff]
    %v82 = vld [vmem:[#allocation4 + $0x140] sm:$0xff]
    %v83 = vld [vmem:[#allocation4 + $0x148] sm:$0xff]
    %v84 = vld [vmem:[#allocation4 + $0x150] sm:$0xff]
    %v85 = vld [vmem:[#allocation4 + $0x158] sm:$0xff]
    %v86 = vld [vmem:[#allocation4 + $0x160] sm:$0xff]
    %v87 = vld [vmem:[#allocation4 + $0x168] sm:$0xff]
    %v88 = vld [vmem:[#allocation4 + $0x170] sm:$0xff]
    %v89 = vld [vmem:[#allocation4 + $0x178] sm:$0xff]
    %v90 = vld [vmem:[#allocation4 + $0x180] sm:$0xff]
    %v91 = vld [vmem:[#allocation4 + $0x188] sm:$0xff]
    %v92 = vld [vmem:[#allocation4 + $0x190] sm:$0xff]
    %v93 = vld [vmem:[#allocation4 + $0x198] sm:$0xff]
    %v94 = vld [vmem:[#allocation4 + $0x1a0] sm:$0xff]
    %v95 = vld [vmem:[#allocation4 + $0x1a8] sm:$0xff]
    %v96 = vld [vmem:[#allocation4 + $0x1b0] sm:$0xff]
    %v97 = vld [vmem:[#allocation4 + $0x1b8] sm:$0x1]
    %v98 = vperm.slane %v46, 0
    %vm99 = vcmask 261120
    %v101 = vsel %vm99, %v41, 0
    %103 = vmatpush.msra.mxu0 0.0
    %104 = vmatpush.msra.mxu0 0.0
    %105 = vmatpush.msra.mxu0 0.0
    %106 = vmatpush.msra.mxu0 0.0
    %107 = vmatpush.msra.mxu0 0.0
    %108 = vmatpush.msra.mxu0 0.0
    %109 = vmatpush.msra.mxu0 0.0
    %110 = vmatpush.msra.mxu0 0.0
    %111 = vmatpush.msra.mxu0 0.0
    %112 = vmatpush.msra.mxu0 0.0
    %113 = vmatpush.msra.mxu0 0.0
    %114 = vmatpush.msra.mxu0 0.0
    %115 = vmatpush.msra.mxu0 %v45
    %116 = vmatpush.msra.mxu0 %v44
    %117 = vmatpush.msra.mxu0 %v43
    %118 = vmatpush.msra.mxu0 %v42
    %119 = vmatmul.f32.gmra.mxu0 %v101
    %v120 = vpop.f32.mrf.mxu0
    %v121 = vadd.f32 %v98, %v120
    %122 = vdwg.mxu0
    %v123 = vmax.f32 %v121, 0.0
    %v124 = vperm.slane %v63, 0
    %125 = vmatpush.msra.mxu0 %v62
    %126 = vmatpush.msra.mxu0 %v61
    %127 = vmatpush.msra.mxu0 %v60
    %128 = vmatpush.msra.mxu0 %v59
    %129 = vmatpush.msra.mxu0 %v58
    %130 = vmatpush.msra.mxu0 %v57
    %131 = vmatpush.msra.mxu0 %v56
    %132 = vmatpush.msra.mxu0 %v55
    %133 = vmatpush.msra.mxu0 %v54
    %134 = vmatpush.msra.mxu0 %v53
    %135 = vmatpush.msra.mxu0 %v52
    %136 = vmatpush.msra.mxu0 %v51
    %137 = vmatpush.msra.mxu0 %v50
    %138 = vmatpush.msra.mxu0 %v49
    %139 = vmatpush.msra.mxu0 %v48
    %140 = vmatpush.msra.mxu0 %v47
    %141 = vmatmul.f32.gmra.mxu0 %v123
    %v142 = vpop.f32.mrf.mxu0
    %v143 = vadd.f32 %v124, %v142
    %144 = vdwg.mxu0
    %v145 = vperm.slane %v80, 0
    %146 = vmatpush.msra.mxu0 %v79
    %147 = vmatpush.msra.mxu0 %v78
    %148 = vmatpush.msra.mxu0 %v77
    %149 = vmatpush.msra.mxu0 %v76
    %150 = vmatpush.msra.mxu0 %v75
    %151 = vmatpush.msra.mxu0 %v74
    %152 = vmatpush.msra.mxu0 %v73
    %153 = vmatpush.msra.mxu0 %v72
    %154 = vmatpush.msra.mxu0 %v71
    %155 = vmatpush.msra.mxu0 %v70
    %156 = vmatpush.msra.mxu0 %v69
    %157 = vmatpush.msra.mxu0 %v68
    %158 = vmatpush.msra.mxu0 %v67
    %159 = vmatpush.msra.mxu0 %v66
    %160 = vmatpush.msra.mxu0 %v65
    %161 = vmatpush.msra.mxu0 %v64
    %162 = vmatmul.f32.gmra.mxu0 %v143
    %v163 = vpop.f32.mrf.mxu0
    %v164 = vadd.f32 %v145, %v163
    %165 = vdwg.mxu0
    %v166 = vmax.f32 %v164, 0.0
    %v167 = vperm.slane %v97, 0
    %168 = vmatpush.msra.mxu0 %v96
    %169 = vmatpush.msra.mxu0 %v95
    %170 = vmatpush.msra.mxu0 %v94
    %171 = vmatpush.msra.mxu0 %v93
    %172 = vmatpush.msra.mxu0 %v92
    %173 = vmatpush.msra.mxu0 %v91
    %174 = vmatpush.msra.mxu0 %v90
    %175 = vmatpush.msra.mxu0 %v89
    %176 = vmatpush.msra.mxu0 %v88
    %177 = vmatpush.msra.mxu0 %v87
    %178 = vmatpush.msra.mxu0 %v86
    %179 = vmatpush.msra.mxu0 %v85
    %180 = vmatpush.msra.mxu0 %v84
    %181 = vmatpush.msra.mxu0 %v83
    %182 = vmatpush.msra.mxu0 %v82
    %183 = vmatpush.msra.mxu0 %v81
    %184 = vmatmul.f32.gmra.mxu0 %v166
    %v185 = vpop.f32.mrf.mxu0
    %v186 = vadd.f32 %v167, %v185
    %187 = vdwg.mxu0
    %v188 = vsub.f32 %v186, %v41
    %v189 = vmul.f32 %v188, %v188
    %v190 = vsel %vm99, %v189, 0.0
    %191 = vadd.xlane.f32.xlu0 %v190
    %v192 = vpop.xlane.xlu0 %191
    %v193 = vrcp.pop 32.0
    %v194 = vmul.f32 32.0, %v193
    %v195 = vsub.f32 1.0, %v194
    %v196 = vmul.f32 %v193, %v195
    %v197 = vadd.f32 %v193, %v196
    %vm198 = vweird.f32 %v193
    %v199 = vsel %vm198, %v193, %v197
    %v200 = vmul.f32 %v192, %v199
    %201 = vrot.lane.b32.xlu0 %v41, 32
    %v202 = vpop.permute.xlu0 %201
    %v204 = vsub.f32 %v186, %v202
    %v205 = vmul.f32 %v204, %v204
    %207 = vrot.lane.b32.xlu0 %v205, 96
    %v208 = vpop.permute.xlu0 %207
    %v210 = vsel %vm99, %v208, 0.0
    %211 = vadd.xlane.f32.xlu0 %v210
    %v212 = vpop.xlane.xlu0 %211
    %v213 = vmul.f32 %v212, %v199
    %214 = vrot.lane.b32.xlu0 %v41, 64
    %v215 = vpop.permute.xlu0 %214
    %v217 = vsub.f32 %v186, %v215
    %v218 = vmul.f32 %v217, %v217
    %220 = vrot.lane.b32.xlu0 %v218, 64
    %v221 = vpop.permute.xlu0 %220
    %v223 = vsel %vm99, %v221, 0.0
    %224 = vadd.xlane.f32.xlu0 %v223
    %v225 = vpop.xlane.xlu0 %224
    %v226 = vmul.f32 %v225, %v199
    %227 = vrot.lane.b32.xlu0 %v41, 96
    %v228 = vpop.permute.xlu0 %227
    %v230 = vsub.f32 %v186, %v228
    %v231 = vmul.f32 %v230, %v230
    %233 = vrot.lane.b32.xlu0 %v231, 32
    %v234 = vpop.permute.xlu0 %233
    %v236 = vsel %vm99, %v234, 0.0
    %237 = vadd.xlane.f32.xlu0 %v236
    %v238 = vpop.xlane.xlu0 %237
    %v239 = vmul.f32 %v238, %v199
    %vm240 = vcmp.lt.f32.partialorder %v213, %v200
    %v241 = vsel %vm240, %v213, %v200
    %v242 = vsel %vm240, 1.0, 0.0
    %v243 = vsel %vm240, 1, 0
    %vm244 = vcmp.eq.s32.totalorder %v243, 1
    %246 = vrot.lane.b32.xlu0 %v143, 16
    %v247 = vpop.permute.xlu0 %246
    %v249 = vsel %vm244, %v143, %v247
    %251 = vrot.lane.b32.xlu0 %v186, 32
    %v252 = vpop.permute.xlu0 %251
    %v254 = vsel %vm244, %v186, %v252
    %vm255 = vcmp.lt.f32.partialorder %v226, %v241
    %v256 = vsel %vm255, %v226, %v241
    %v257 = vsel %vm255, 2.0, %v242
    %v258 = vsel %vm255, 1, 0
    %vm259 = vcmp.eq.s32.totalorder %v258, 1
    %261 = vrot.lane.b32.xlu0 %v249, 16
    %v262 = vpop.permute.xlu0 %261
    %v264 = vsel %vm259, %v143, %v262
    %266 = vrot.lane.b32.xlu0 %v254, 32
    %v267 = vpop.permute.xlu0 %266
    %v269 = vsel %vm259, %v186, %v267
    %vm270 = vcmp.lt.f32.partialorder %v239, %v256
    %v271 = vsel %vm270, %v239, %v256
    %v272 = vsel %vm270, 3.0, %v257
    %v273 = vsel %vm270, 1, 0
    %vm274 = vcmp.eq.s32.totalorder %v273, 1
    %276 = vrot.lane.b32.xlu0 %v264, 16
    %v277 = vpop.permute.xlu0 %276
    %v279 = vsel %vm274, %v143, %v277
    %281 = vrot.lane.b32.xlu0 %v269, 32
    %v282 = vpop.permute.xlu0 %281
    %v284 = vsel %vm274, %v186, %v282
    %286 = vrot.lane.b32.xlu0 %v279, 80
    %v287 = vpop.permute.xlu0 %286
    %290 = vrot.lane.b32.xlu0 %v284, 48
    %v291 = vpop.permute.xlu0 %290
    %vm293 = vcmask 130048
    %v294 = vsel %vm293, %v287, %v291
    %vm295 = vcmask 392192
    %v296 = vsel %vm295, %v294, %v271
    %vm297 = vcmask 457728
    %v298 = vsel %vm297, %v296, %v272
    %vm299 = vcmask 523264
    %v300 = vsel %vm299, %v298, 0.0
    %301 = vst [vmem:[%s2] sm:$0xff] %v300
    // Predicated region
    $region18: #{_lambda_.1} parent=1 // pred_check
      _
    $region19: #{_lambda_.1} parent=1 // pred_check_branch
      %303 = sbr.rel (0) target = $region21
    $region20: #{_lambda_.1} parent=1 // pred_region
      _
    $region21: #{_lambda_.1} parent=1 // pred_fallthru
      _
    // Predicated region
    $region22: #{_lambda_.1} parent=1 // pred_check
      _
    $region23: #{_lambda_.1} parent=1 // pred_check_branch
      %305 = sbr.rel (0) target = $region25
    $region24: #{_lambda_.1} parent=1 // pred_region
      _
    $region25: #{_lambda_.1} parent=1 // pred_fallthru
      _
    %306 = vsyncpa [#allocation3], 1
    %307 = vsyncpa [#allocation5], 1

</llo_original>
